<compile_context>
chip_gen: v5e
topology: v5e:2x2
jax: 0.10.0
libtpu: 0.0.40
codegen_flags: <defaults>
</compile_context>

<pallas_src>
import jax
import jax.numpy as jnp
from jax.experimental import pallas as pl
from jax.experimental.pallas import tpu as pltpu

# ---- module hyper-parameters (mirrors ContinuousPolicyNetwork.__init__) ----
OBS_DIM = 32
ACTION_DIM = 8
HIDDEN_DIMS = (128, 128)
LOG_STD_INIT = -0.5
LOG_STD_MIN = -20.0
LOG_STD_MAX = 2.0
ACTION_SCALE = 1.0

# Max rows per grid step (multiple of 8).  2048 keeps the double-buffered
# obs/out tiles + h1/h2 intermediates well under the default scoped-VMEM
# limit on all generations (incl. v7x's 64 MiB physical VMEM).
TILE_B_MAX = 2048
# Above this batch size, force >= 2 grid steps so "parallel" can actually
# shard across v7x's two TensorCores.
MIN_SPLIT_B = 512


def _cdiv(a, b):
    return -(-a // b)


def _round_up(x, m):
    return ((x + m - 1) // m) * m


def _choose_tile_b(B):
    """Pick rows-per-step: even split of B over the fewest steps that fit."""
    n_steps = _cdiv(B, TILE_B_MAX)
    if B >= MIN_SPLIT_B:
        n_steps = max(n_steps, 2)          # v7x: use both TensorCores
    tile_b = _round_up(_cdiv(B, n_steps), 8)
    if tile_b >= B:
        tile_b = B                         # single full-array block (any B)
    return tile_b


def _orthogonal(key, shape, gain):
    """Deterministic orthogonal init (same semantics as nn.init.orthogonal_)."""
    rows, cols = shape
    flat = jax.random.normal(key, (max(rows, cols), min(rows, cols)), jnp.float32)
    q, r = jnp.linalg.qr(flat)
    q = q * jnp.sign(jnp.diagonal(r))
    if rows < cols:
        q = q.T
    return (gain * q[:rows, :cols]).astype(jnp.float32)


def init_params(key):
    """Deterministic parameter construction for the 3-layer MLP + log_std.

    Weights are stored transposed vs. PyTorch, i.e. (in_features, out_features)
    bf16, so the hot path is a plain `x @ W + b` chain on the MXU.  Biases
    stay f32.  No lane padding of the last layer (see header).
    """
    ks = jax.random.split(key, 3)
    gain = jnp.sqrt(2.0)
    dims = (OBS_DIM,) + HIDDEN_DIMS + (ACTION_DIM,)
    params = {}
    for i, (d_in, d_out) in enumerate(zip(dims[:-1], dims[1:])):
        w_pt = _orthogonal(ks[i], (d_out, d_in), gain)   # PyTorch (out, in)
        params[f"w{i+1}"] = w_pt.T.astype(jnp.bfloat16)  # (in, out) bf16
        params[f"b{i+1}"] = jnp.zeros((1, d_out), jnp.float32)
    params["log_std"] = jnp.full((ACTION_DIM,), LOG_STD_INIT, jnp.float32)
    return params


# --------------------------- Pallas kernel ---------------------------------
def _policy_fwd_kernel(obs_ref, w1_ref, b1_ref, w2_ref, b2_ref, w3_ref, b3_ref,
                       mean_ref):
    # bf16 inputs to the MXU, f32 accumulation, f32 elementwise epilogue.
    x = obs_ref[...].astype(jnp.bfloat16)                       # (tile_b, OBS_DIM)

    h1 = jnp.dot(x, w1_ref[...], preferred_element_type=jnp.float32) + b1_ref[...]
    h1 = jnp.maximum(h1, 0.0).astype(jnp.bfloat16)              # ReLU

    h2 = jnp.dot(h1, w2_ref[...], preferred_element_type=jnp.float32) + b2_ref[...]
    h2 = jnp.maximum(h2, 0.0).astype(jnp.bfloat16)              # ReLU

    out = jnp.dot(h2, w3_ref[...], preferred_element_type=jnp.float32) + b3_ref[...]
    mean_ref[...] = jnp.tanh(out) * ACTION_SCALE                # (tile_b, ACTION_DIM)


@jax.jit
def policy_forward(obs, params):
    """Returns (mean, std) exactly like ContinuousPolicyNetwork.forward.

    mean: (B, ACTION_DIM) float32
    std:  (ACTION_DIM,)   float32  (parameter-only, matches torch broadcasting)
    """
    B = obs.shape[0]
    h1, h2 = HIDDEN_DIMS

    tile_b = _choose_tile_b(B)
    grid = (_cdiv(B, tile_b),)            # partial last block handled by Pallas

    const = lambda i: (0, 0)              # weights/biases resident across grid

    param_bytes = sum(int(v.size) * v.dtype.itemsize
                      for k, v in params.items() if k != "log_std")
    cost = pl.CostEstimate(
        flops=2 * B * (OBS_DIM * h1 + h1 * h2 + h2 * ACTION_DIM),
        transcendentals=B * ACTION_DIM,
        bytes_accessed=int(obs.size) * obs.dtype.itemsize + param_bytes
                       + B * ACTION_DIM * 4,
    )

    mean = pl.pallas_call(
        _policy_fwd_kernel,
        out_shape=jax.ShapeDtypeStruct((B, ACTION_DIM), jnp.float32),
        grid=grid,
        in_specs=[
            pl.BlockSpec((tile_b, OBS_DIM), lambda i: (i, 0)),   # obs tile
            pl.BlockSpec((OBS_DIM, h1), const),                  # w1
            pl.BlockSpec((1, h1), const),                        # b1
            pl.BlockSpec((h1, h2), const),                       # w2
            pl.BlockSpec((1, h2), const),                        # b2
            pl.BlockSpec((h2, ACTION_DIM), const),               # w3
            pl.BlockSpec((1, ACTION_DIM), const),                # b3
        ],
        out_specs=pl.BlockSpec((tile_b, ACTION_DIM), lambda i: (i, 0)),
        compiler_params=pltpu.CompilerParams(
            dimension_semantics=("parallel",),
        ),
        cost_estimate=cost,
    )(
        obs,
        params["w1"], params["b1"],
        params["w2"], params["b2"],
        params["w3"], params["b3"],
    )

    # std is a pure function of a tiny parameter — compute outside the kernel.
    std = jnp.exp(jnp.clip(params["log_std"], LOG_STD_MIN, LOG_STD_MAX))
    return mean, std


def policy_forward_ref(obs, params):
    """Pure-JAX reference.

    Note: uses the same bf16-weight / f32-accum path as the kernel, so it
    validates the kernel implementation, not the fp32 PyTorch module; bf16
    introduces ~1e-2 relative error vs the fp32 original (fine for RL).
    """
    x = obs.astype(jnp.bfloat16)
    a1 = jnp.maximum(
        jnp.dot(x, params["w1"], preferred_element_type=jnp.float32)
        + params["b1"], 0.0).astype(jnp.bfloat16)
    a2 = jnp.maximum(
        jnp.dot(a1, params["w2"], preferred_element_type=jnp.float32)
        + params["b2"], 0.0).astype(jnp.bfloat16)
    out = (jnp.dot(a2, params["w3"], preferred_element_type=jnp.float32)
           + params["b3"])
    mean = jnp.tanh(out) * ACTION_SCALE
    std = jnp.exp(jnp.clip(params["log_std"], LOG_STD_MIN, LOG_STD_MAX))
    return mean, std


if __name__ == "__main__":
    key = jax.random.PRNGKey(0)
    k_params, k_obs = jax.random.split(key)

    params = init_params(k_params)

    # Small batch: single full-array block, no padding anywhere.
    batch = 8
    obs = jax.random.normal(k_obs, (batch, OBS_DIM), jnp.float32)
    mean, std = policy_forward(obs, params)
    jax.block_until_ready((mean, std))

    mean_ref, std_ref = policy_forward_ref(obs, params)
    assert mean.shape == (batch, ACTION_DIM)
    assert std.shape == (ACTION_DIM,)
    assert jnp.allclose(mean, mean_ref, atol=2e-2, rtol=2e-2), "mean mismatch (small batch)"
    assert jnp.allclose(std, std_ref, atol=1e-6, rtol=1e-6), "std mismatch"

    # Larger batch: >=2 grid steps (v7x dual-TC path) with a partial last block.
    big_batch = 600
    obs_big = jax.random.normal(jax.random.PRNGKey(1), (big_batch, OBS_DIM), jnp.float32)
    mean_big, std_big = policy_forward(obs_big, params)
    jax.block_until_ready((mean_big, std_big))
    mean_big_ref, _ = policy_forward_ref(obs_big, params)
    assert mean_big.shape == (big_batch, ACTION_DIM)
    assert jnp.allclose(mean_big, mean_big_ref, atol=2e-2, rtol=2e-2), "mean mismatch (big batch)"

    print("KERNEL_OK")
</pallas_src>

<mosaic_0001>
module attributes {stable_mosaic.version = 11 : i64} {
  func.func @_policy_fwd_kernel(%arg0: i32, %arg1: memref<8x32xf32, #tpu.memory_space<vmem>>, %arg2: memref<32x128xbf16, #tpu.memory_space<vmem>>, %arg3: memref<1x128xf32, #tpu.memory_space<vmem>>, %arg4: memref<128x128xbf16, #tpu.memory_space<vmem>>, %arg5: memref<1x128xf32, #tpu.memory_space<vmem>>, %arg6: memref<128x8xbf16, #tpu.memory_space<vmem>>, %arg7: memref<1x8xf32, #tpu.memory_space<vmem>>, %arg8: memref<8x8xf32, #tpu.memory_space<vmem>>) attributes {dimension_semantics = [#tpu.dimension_semantics<parallel>], iteration_bounds = array<i64: 1>, scalar_prefetch = 0 : i64, scratch_operands = 0 : i64, tpu.core_type = #tpu.core_type<tc>, window_params = [{transform_indices = @transform_0, window_bounds = array<i64: 8, 32>}, {pipeline_mode = #tpu.pipeline_mode<synchronous>, transform_indices = @transform_1, window_bounds = array<i64: 32, 128>}, {pipeline_mode = #tpu.pipeline_mode<synchronous>, transform_indices = @transform_2, window_bounds = array<i64: 1, 128>}, {pipeline_mode = #tpu.pipeline_mode<synchronous>, transform_indices = @transform_3, window_bounds = array<i64: 128, 128>}, {pipeline_mode = #tpu.pipeline_mode<synchronous>, transform_indices = @transform_4, window_bounds = array<i64: 1, 128>}, {pipeline_mode = #tpu.pipeline_mode<synchronous>, transform_indices = @transform_5, window_bounds = array<i64: 128, 8>}, {pipeline_mode = #tpu.pipeline_mode<synchronous>, transform_indices = @transform_6, window_bounds = array<i64: 1, 8>}, {transform_indices = @transform_7, window_bounds = array<i64: 8, 8>}]} {
    %c0 = arith.constant 0 : index
    %c0_0 = arith.constant 0 : index
    %0 = vector.load %arg1[%c0, %c0_0] : memref<8x32xf32, #tpu.memory_space<vmem>>, vector<8x32xf32>
    %1 = arith.truncf %0 : vector<8x32xf32> to vector<8x32xbf16>
    %c0_1 = arith.constant 0 : index
    %c0_2 = arith.constant 0 : index
    %2 = vector.load %arg2[%c0_1, %c0_2] : memref<32x128xbf16, #tpu.memory_space<vmem>>, vector<32x128xbf16>
    %cst = arith.constant dense<0.000000e+00> : vector<8x128xf32>
    %3 = tpu.matmul %1, %2, %cst {dimension_numbers = #tpu.dot_dimension_numbers<[1], [0], [0], [1], [0, 0, 1, 1], [], []>} : vector<8x32xbf16>, vector<32x128xbf16>, vector<8x128xf32> -> vector<8x128xf32>
    %c0_3 = arith.constant 0 : index
    %c0_4 = arith.constant 0 : index
    %4 = vector.load %arg3[%c0_3, %c0_4] : memref<1x128xf32, #tpu.memory_space<vmem>>, vector<1x128xf32>
    %5 = vector.broadcast %4 : vector<1x128xf32> to vector<8x128xf32>
    %6 = arith.addf %3, %5 : vector<8x128xf32>
    %cst_5 = arith.constant 0.000000e+00 : f32
    %7 = vector.broadcast %cst_5 : f32 to vector<8x128xf32>
    %8 = arith.maximumf %6, %7 : vector<8x128xf32>
    %9 = arith.truncf %8 : vector<8x128xf32> to vector<8x128xbf16>
    %c0_6 = arith.constant 0 : index
    %c0_7 = arith.constant 0 : index
    %10 = vector.load %arg4[%c0_6, %c0_7] : memref<128x128xbf16, #tpu.memory_space<vmem>>, vector<128x128xbf16>
    %cst_8 = arith.constant dense<0.000000e+00> : vector<8x128xf32>
    %11 = tpu.matmul %9, %10, %cst_8 {dimension_numbers = #tpu.dot_dimension_numbers<[1], [0], [0], [1], [0, 0, 1, 1], [], []>} : vector<8x128xbf16>, vector<128x128xbf16>, vector<8x128xf32> -> vector<8x128xf32>
    %c0_9 = arith.constant 0 : index
    %c0_10 = arith.constant 0 : index
    %12 = vector.load %arg5[%c0_9, %c0_10] : memref<1x128xf32, #tpu.memory_space<vmem>>, vector<1x128xf32>
    %13 = vector.broadcast %12 : vector<1x128xf32> to vector<8x128xf32>
    %14 = arith.addf %11, %13 : vector<8x128xf32>
    %cst_11 = arith.constant 0.000000e+00 : f32
    %15 = vector.broadcast %cst_11 : f32 to vector<8x128xf32>
    %16 = arith.maximumf %14, %15 : vector<8x128xf32>
    %17 = arith.truncf %16 : vector<8x128xf32> to vector<8x128xbf16>
    %c0_12 = arith.constant 0 : index
    %c0_13 = arith.constant 0 : index
    %18 = vector.load %arg6[%c0_12, %c0_13] : memref<128x8xbf16, #tpu.memory_space<vmem>>, vector<128x8xbf16>
    %cst_14 = arith.constant dense<0.000000e+00> : vector<8x8xf32>
    %19 = tpu.matmul %17, %18, %cst_14 {dimension_numbers = #tpu.dot_dimension_numbers<[1], [0], [0], [1], [0, 0, 1, 1], [], []>} : vector<8x128xbf16>, vector<128x8xbf16>, vector<8x8xf32> -> vector<8x8xf32>
    %c0_15 = arith.constant 0 : index
    %c0_16 = arith.constant 0 : index
    %20 = vector.load %arg7[%c0_15, %c0_16] : memref<1x8xf32, #tpu.memory_space<vmem>>, vector<1x8xf32>
    %21 = vector.broadcast %20 : vector<1x8xf32> to vector<8x8xf32>
    %22 = arith.addf %19, %21 : vector<8x8xf32>
    %23 = math.tanh %22 : vector<8x8xf32>
    %cst_17 = arith.constant 1.000000e+00 : f32
    %24 = vector.broadcast %cst_17 : f32 to vector<8x8xf32>
    %25 = arith.mulf %23, %24 : vector<8x8xf32>
    %c0_18 = arith.constant 0 : index
    %c0_19 = arith.constant 0 : index
    %26 = vector.load %arg8[%c0_18, %c0_19] : memref<8x8xf32, #tpu.memory_space<vmem>>, vector<8x8xf32>
    tpu.vector_store %arg8[%c0_18, %c0_19], %25 {strides = array<i32>} : memref<8x8xf32, #tpu.memory_space<vmem>>, vector<8x8xf32>,
    return
  }
  func.func @transform_0(%arg0: i32) -> (i32, i32) {
    %c0_i32 = arith.constant 0 : i32
    %c0_i32_0 = arith.constant 0 : i32
    return %arg0, %c0_i32 : i32, i32
  }
  func.func @transform_1(%arg0: i32) -> (i32, i32) {
    %c0_i32 = arith.constant 0 : i32
    %c0_i32_0 = arith.constant 0 : i32
    %c0_i32_1 = arith.constant 0 : i32
    return %c0_i32, %c0_i32_0 : i32, i32
  }
  func.func @transform_2(%arg0: i32) -> (i32, i32) {
    %c0_i32 = arith.constant 0 : i32
    %c0_i32_0 = arith.constant 0 : i32
    %c0_i32_1 = arith.constant 0 : i32
    return %c0_i32, %c0_i32_0 : i32, i32
  }
  func.func @transform_3(%arg0: i32) -> (i32, i32) {
    %c0_i32 = arith.constant 0 : i32
    %c0_i32_0 = arith.constant 0 : i32
    %c0_i32_1 = arith.constant 0 : i32
    return %c0_i32, %c0_i32_0 : i32, i32
  }
  func.func @transform_4(%arg0: i32) -> (i32, i32) {
    %c0_i32 = arith.constant 0 : i32
    %c0_i32_0 = arith.constant 0 : i32
    %c0_i32_1 = arith.constant 0 : i32
    return %c0_i32, %c0_i32_0 : i32, i32
  }
  func.func @transform_5(%arg0: i32) -> (i32, i32) {
    %c0_i32 = arith.constant 0 : i32
    %c0_i32_0 = arith.constant 0 : i32
    %c0_i32_1 = arith.constant 0 : i32
    return %c0_i32, %c0_i32_0 : i32, i32
  }
  func.func @transform_6(%arg0: i32) -> (i32, i32) {
    %c0_i32 = arith.constant 0 : i32
    %c0_i32_0 = arith.constant 0 : i32
    %c0_i32_1 = arith.constant 0 : i32
    return %c0_i32, %c0_i32_0 : i32, i32
  }
  func.func @transform_7(%arg0: i32) -> (i32, i32) {
    %c0_i32 = arith.constant 0 : i32
    %c0_i32_0 = arith.constant 0 : i32
    return %arg0, %c0_i32 : i32, i32
  }
}

</mosaic_0001>

<llo_original>
// kernel: policy_forward.1
$region0: #{policy_forward.1}
  #allocation0 [shape = 'u32[]', space=smem, size = 0x4, offset = 0x4, fixed_abs, tag = 'smem constant byte address 0x4 - core index']
  #allocation1 [shape = 'u32[72,128]{1,0:T(1,128)}', space=vmem, size = 0x9000, scoped, tag = 'internal scratch']
  %s0 = inlined_call_operand.vmem [shape: f32[8,32], index: 0, kind: input, shape index: {}]
  %s1 = inlined_call_operand.hbm [shape: bf16[32,128], index: 1, kind: input, shape index: {}]
  %s2 = inlined_call_operand.hbm [shape: f32[1,128], index: 2, kind: input, shape index: {}]
  %s3 = inlined_call_operand.vmem [shape: bf16[128,128], index: 3, kind: input, shape index: {}]
  %s4 = inlined_call_operand.hbm [shape: f32[1,128], index: 4, kind: input, shape index: {}]
  %s5 = inlined_call_operand.vmem [shape: bf16[128,8], index: 5, kind: input, shape index: {}]
  %s6 = inlined_call_operand.hbm [shape: f32[1,8], index: 6, kind: input, shape index: {}]
  %s7 = inlined_call_operand.hbm [shape: f32[8,8], index: 7, kind: output, shape index: {}]
  %s8 = sld [smem:[#allocation0]]
  $region54: #{policy_forward.1} parent=0
    _
  %s10 = ssub.s32 1, %s8
  %s11 = scalar_select 0, %s10, %s8
  $region1: #{policy_forward.1} parent=0
    #allocation2 [shape = 'u8[8192]{0}', space=vmem, size = 0x2000, scoped, tag = 'input window, operand 1, single buffered']
    #allocation3 [shape = 's32[1]{0}', space=sflag, size = 0x4, scoped, tag = 'scoped memory for policy_forward.1']
    #allocation4 [shape = 's32[1]{0}', space=sflag, size = 0x4, scoped, tag = 'scoped memory for policy_forward.1']
    #allocation5 [shape = 'u8[512]{0}', space=vmem, size = 0x400, scoped, tag = 'input window, operand 2, single buffered']
    #allocation6 [shape = 's32[1]{0}', space=sflag, size = 0x4, scoped, tag = 'scoped memory for policy_forward.1']
    #allocation7 [shape = 'u8[512]{0}', space=vmem, size = 0x400, scoped, tag = 'input window, operand 4, single buffered']
    #allocation8 [shape = 'u8[512]{0}', space=vmem, size = 0x400, scoped, tag = 'input window, operand 6, single buffered']
    #allocation9 [shape = 's32[1]{0}', space=sflag, size = 0x4, scoped, tag = 'scoped memory for policy_forward.1']
    #allocation10 [shape = 'u8[4096]{0}', space=vmem, size = 0x1000, scoped, tag = 'output window, operand 0, single buffered']
    %12 = vsyncpa [#allocation3], 0
    %13 = vsyncpa [#allocation6], 0
    %14 = vsyncpa [#allocation9], 0
    %15 = vsyncpa [#allocation4], 0
    // Predicated region
    $region2: #{policy_forward.1} parent=1 // pred_check
      _
    $region3: #{policy_forward.1} parent=1 // pred_check_branch
      %17 = sbr.rel (0) target = $region5
    $region4: #{policy_forward.1} parent=1 // pred_region
      _
    $region5: #{policy_forward.1} parent=1 // pred_fallthru
      _
    // Predicated region
    $region6: #{policy_forward.1} parent=1 // pred_check
      _
    $region7: #{policy_forward.1} parent=1 // pred_check_branch
      %19 = sbr.rel (0) target = $region9
    $region8: #{policy_forward.1} parent=1 // pred_region
      %21 = vsyncadd [#allocation3], 0
      %s22 = sshll.u32 %s1, 4
      %s23 = int_to_ptr.hbm [resolvable:$true] %s22
      %s24 = sshll.u32 [#allocation2], 4
      %s25 = int_to_ptr.vmem [resolvable:$true] %s24
      %30 = dma.hbm_to_vmem [thread:$0]  %s23, 256, %s25, [#allocation3], 64, 64, 4
    $region9: #{policy_forward.1} parent=1 // pred_fallthru
      _
    // Predicated region
    $region10: #{policy_forward.1} parent=1 // pred_check
      _
    $region11: #{policy_forward.1} parent=1 // pred_check_branch
      %32 = sbr.rel (0) target = $region13
    $region12: #{policy_forward.1} parent=1 // pred_region
      %34 = vsyncadd [#allocation6], 0
      %s36 = sshll.u32 %s2, 4
      %s37 = int_to_ptr.hbm [resolvable:$true] %s36
      %s38 = sshll.u32 [#allocation5], 4
      %s39 = int_to_ptr.vmem [resolvable:$true] %s38
      %41 = dma.hbm_to_vmem [thread:$0]  %s37, 16, %s39, [#allocation6]
    $region13: #{policy_forward.1} parent=1 // pred_fallthru
      _
    // Predicated region
    $region14: #{policy_forward.1} parent=1 // pred_check
      _
    $region15: #{policy_forward.1} parent=1 // pred_check_branch
      %43 = sbr.rel (0) target = $region17
    $region16: #{policy_forward.1} parent=1 // pred_region
      _
    $region17: #{policy_forward.1} parent=1 // pred_fallthru
      _
    // Predicated region
    $region18: #{policy_forward.1} parent=1 // pred_check
      _
    $region19: #{policy_forward.1} parent=1 // pred_check_branch
      %45 = sbr.rel (0) target = $region21
    $region20: #{policy_forward.1} parent=1 // pred_region
      %47 = vsyncadd [#allocation6], 0
      %s49 = sshll.u32 %s4, 4
      %s50 = int_to_ptr.hbm [resolvable:$true] %s49
      %s51 = sshll.u32 [#allocation7], 4
      %s52 = int_to_ptr.vmem [resolvable:$true] %s51
      %54 = dma.hbm_to_vmem [thread:$0]  %s50, 16, %s52, [#allocation6]
    $region21: #{policy_forward.1} parent=1 // pred_fallthru
      _
    // Predicated region
    $region22: #{policy_forward.1} parent=1 // pred_check
      _
    $region23: #{policy_forward.1} parent=1 // pred_check_branch
      %56 = sbr.rel (0) target = $region25
    $region24: #{policy_forward.1} parent=1 // pred_region
      _
    $region25: #{policy_forward.1} parent=1 // pred_fallthru
      _
    // Predicated region
    $region26: #{policy_forward.1} parent=1 // pred_check
      _
    $region27: #{policy_forward.1} parent=1 // pred_check_branch
      %58 = sbr.rel (0) target = $region29
    $region28: #{policy_forward.1} parent=1 // pred_region
      %60 = vsyncadd [#allocation9], 0
      %s62 = sshll.u32 %s6, 4
      %s63 = int_to_ptr.hbm [resolvable:$true] %s62
      %s64 = sshll.u32 [#allocation8], 4
      %s65 = int_to_ptr.vmem [resolvable:$true] %s64
      %67 = dma.hbm_to_vmem [thread:$0]  %s63, 16, %s65, [#allocation9]
    $region29: #{policy_forward.1} parent=1 // pred_fallthru
      _
    // Predicated region
    $region30: #{policy_forward.1} parent=1 // pred_check
      _
    $region31: #{policy_forward.1} parent=1 // pred_check_branch
      %69 = sbr.rel (0) target = $region33
    $region32: #{policy_forward.1} parent=1 // pred_region
      %71 = dma.done [#allocation3], 256
    $region33: #{policy_forward.1} parent=1 // pred_fallthru
      _
    // Predicated region
    $region34: #{policy_forward.1} parent=1 // pred_check
      _
    $region35: #{policy_forward.1} parent=1 // pred_check_branch
      %73 = sbr.rel (0) target = $region37
    $region36: #{policy_forward.1} parent=1 // pred_region
      %75 = dma.done [#allocation6], 16
    $region37: #{policy_forward.1} parent=1 // pred_fallthru
      _
    // Predicated region
    $region38: #{policy_forward.1} parent=1 // pred_check
      _
    $region39: #{policy_forward.1} parent=1 // pred_check_branch
      %77 = sbr.rel (0) target = $region41
    $region40: #{policy_forward.1} parent=1 // pred_region
      %79 = dma.done [#allocation6], 16
    $region41: #{policy_forward.1} parent=1 // pred_fallthru
      _
    // Predicated region
    $region42: #{policy_forward.1} parent=1 // pred_check
      _
    $region43: #{policy_forward.1} parent=1 // pred_check_branch
      %81 = sbr.rel (0) target = $region45
    $region44: #{policy_forward.1} parent=1 // pred_region
      %83 = dma.done [#allocation9], 16
    $region45: #{policy_forward.1} parent=1 // pred_fallthru
      _
    %v85 = vld [vmem:[%s0] sm:$0xff]
    %v86 = vpack.c.bf16 %v85, %v85
    %v87 = vld [vmem:[#allocation2] sm:$0xf]
    %v88 = vld [vmem:[#allocation2 + $0x4] sm:$0xf]
    %v89 = vld [vmem:[#allocation2 + $0x8] sm:$0xf]
    %v90 = vld [vmem:[#allocation2 + $0xc] sm:$0xf]
    %v91 = vld [vmem:[#allocation5] sm:$0x1]
    %v93 = vperm.slane %v91, 0
    %v99 = vunpack.c.l.b16 %v87
    %v100 = vunpack.c.l.b16 %v88
    %v101 = vunpack.c.l.b16 %v89
    %v102 = vunpack.c.l.b16 %v90
    %v103 = vpack.c.b16 %v100, %v99
    %v104 = vpack.c.b16 %v102, %v101
    %vm107 = vcmask 261120
    %v109 = vsel %vm107, %v86, 0
    %111 = vmatpush.bf16.msra.mxu0 0
    %112 = vmatpush.bf16.msra.mxu0 0
    %113 = vmatpush.bf16.msra.mxu0 0
    %114 = vmatpush.bf16.msra.mxu0 0
    %115 = vmatpush.bf16.msra.mxu0 0
    %116 = vmatpush.bf16.msra.mxu0 0
    %117 = vmatpush.bf16.msra.mxu0 %v104
    %118 = vmatpush.bf16.msra.mxu0 %v103
    %119 = vmatmul.bf16.gmra.mxu0 %v109
    %v120 = vpop.f32.mrf.mxu0
    %v121 = vadd.f32 %v93, %v120
    %v122 = vpop.f32.mrf.mxu0
    %123 = vdwg.mxu0
    %v124 = vmax.f32 %v121, 0.0
    %v125 = vpack.c.bf16 %v124, %v124
    %v126 = vld [vmem:[%s3] sm:$0xf]
    %v127 = vld [vmem:[%s3 + $0x4] sm:$0xf]
    %v128 = vld [vmem:[%s3 + $0x8] sm:$0xf]
    %v129 = vld [vmem:[%s3 + $0xc] sm:$0xf]
    %v130 = vld [vmem:[%s3 + $0x10] sm:$0xf]
    %v131 = vld [vmem:[%s3 + $0x14] sm:$0xf]
    %v132 = vld [vmem:[%s3 + $0x18] sm:$0xf]
    %v133 = vld [vmem:[%s3 + $0x1c] sm:$0xf]
    %v134 = vld [vmem:[%s3 + $0x20] sm:$0xf]
    %v135 = vld [vmem:[%s3 + $0x24] sm:$0xf]
    %v136 = vld [vmem:[%s3 + $0x28] sm:$0xf]
    %v137 = vld [vmem:[%s3 + $0x2c] sm:$0xf]
    %v138 = vld [vmem:[%s3 + $0x30] sm:$0xf]
    %v139 = vld [vmem:[%s3 + $0x34] sm:$0xf]
    %v140 = vld [vmem:[%s3 + $0x38] sm:$0xf]
    %v141 = vld [vmem:[%s3 + $0x3c] sm:$0xf]
    %v142 = vld [vmem:[#allocation7] sm:$0x1]
    %v144 = vperm.slane %v142, 0
    %v162 = vunpack.c.l.b16 %v126
    %v163 = vunpack.c.l.b16 %v127
    %v164 = vunpack.c.l.b16 %v128
    %v165 = vunpack.c.l.b16 %v129
    %v166 = vunpack.c.l.b16 %v130
    %v167 = vunpack.c.l.b16 %v131
    %v168 = vunpack.c.l.b16 %v132
    %v169 = vunpack.c.l.b16 %v133
    %v170 = vunpack.c.l.b16 %v134
    %v171 = vunpack.c.l.b16 %v135
    %v172 = vunpack.c.l.b16 %v136
    %v173 = vunpack.c.l.b16 %v137
    %v174 = vunpack.c.l.b16 %v138
    %v175 = vunpack.c.l.b16 %v139
    %v176 = vunpack.c.l.b16 %v140
    %v177 = vunpack.c.l.b16 %v141
    %v178 = vpack.c.b16 %v163, %v162
    %v179 = vpack.c.b16 %v165, %v164
    %v180 = vpack.c.b16 %v167, %v166
    %v181 = vpack.c.b16 %v169, %v168
    %v182 = vpack.c.b16 %v171, %v170
    %v183 = vpack.c.b16 %v173, %v172
    %v184 = vpack.c.b16 %v175, %v174
    %v185 = vpack.c.b16 %v177, %v176
    %194 = vmatpush.bf16.msra.mxu0 %v185
    %195 = vmatpush.bf16.msra.mxu0 %v184
    %196 = vmatpush.bf16.msra.mxu0 %v183
    %197 = vmatpush.bf16.msra.mxu0 %v182
    %198 = vmatpush.bf16.msra.mxu0 %v181
    %199 = vmatpush.bf16.msra.mxu0 %v180
    %200 = vmatpush.bf16.msra.mxu0 %v179
    %201 = vmatpush.bf16.msra.mxu0 %v178
    %202 = vmatmul.bf16.gmra.mxu0 %v125
    %v203 = vpop.f32.mrf.mxu0
    %v204 = vadd.f32 %v144, %v203
    %v205 = vpop.f32.mrf.mxu0
    %206 = vdwg.mxu0
    %v207 = vmax.f32 %v204, 0.0
    %v208 = vpack.c.bf16 %v207, %v207
    %v209 = vld [vmem:[%s5] sm:$0xf]
    %v210 = vld [vmem:[%s5 + $0x4] sm:$0xf]
    %v211 = vld [vmem:[%s5 + $0x8] sm:$0xf]
    %v212 = vld [vmem:[%s5 + $0xc] sm:$0xf]
    %v213 = vld [vmem:[%s5 + $0x10] sm:$0xf]
    %v214 = vld [vmem:[%s5 + $0x14] sm:$0xf]
    %v215 = vld [vmem:[%s5 + $0x18] sm:$0xf]
    %v216 = vld [vmem:[%s5 + $0x1c] sm:$0xf]
    %v217 = vld [vmem:[%s5 + $0x20] sm:$0xf]
    %v218 = vld [vmem:[%s5 + $0x24] sm:$0xf]
    %v219 = vld [vmem:[%s5 + $0x28] sm:$0xf]
    %v220 = vld [vmem:[%s5 + $0x2c] sm:$0xf]
    %v221 = vld [vmem:[%s5 + $0x30] sm:$0xf]
    %v222 = vld [vmem:[%s5 + $0x34] sm:$0xf]
    %v223 = vld [vmem:[%s5 + $0x38] sm:$0xf]
    %v224 = vld [vmem:[%s5 + $0x3c] sm:$0xf]
    %v225 = vld [vmem:[#allocation8] sm:$0x1]
    %v227 = vperm.slane %v225, 0
    %v245 = vunpack.c.l.b16 %v209
    %v246 = vunpack.c.l.b16 %v210
    %v247 = vunpack.c.l.b16 %v211
    %v248 = vunpack.c.l.b16 %v212
    %v249 = vunpack.c.l.b16 %v213
    %v250 = vunpack.c.l.b16 %v214
    %v251 = vunpack.c.l.b16 %v215
    %v252 = vunpack.c.l.b16 %v216
    %v253 = vunpack.c.l.b16 %v217
    %v254 = vunpack.c.l.b16 %v218
    %v255 = vunpack.c.l.b16 %v219
    %v256 = vunpack.c.l.b16 %v220
    %v257 = vunpack.c.l.b16 %v221
    %v258 = vunpack.c.l.b16 %v222
    %v259 = vunpack.c.l.b16 %v223
    %v260 = vunpack.c.l.b16 %v224
    %v261 = vpack.c.b16 %v246, %v245
    %v262 = vpack.c.b16 %v248, %v247
    %v263 = vpack.c.b16 %v250, %v249
    %v264 = vpack.c.b16 %v252, %v251
    %v265 = vpack.c.b16 %v254, %v253
    %v266 = vpack.c.b16 %v256, %v255
    %v267 = vpack.c.b16 %v258, %v257
    %v268 = vpack.c.b16 %v260, %v259
    %277 = vmatpush.bf16.msra.mxu0 %v268
    %278 = vmatpush.bf16.msra.mxu0 %v267
    %279 = vmatpush.bf16.msra.mxu0 %v266
    %280 = vmatpush.bf16.msra.mxu0 %v265
    %281 = vmatpush.bf16.msra.mxu0 %v264
    %282 = vmatpush.bf16.msra.mxu0 %v263
    %283 = vmatpush.bf16.msra.mxu0 %v262
    %284 = vmatpush.bf16.msra.mxu0 %v261
    %285 = vmatmul.bf16.gmra.mxu0 %v208
    %v286 = vpop.f32.mrf.mxu0
    %v287 = vadd.f32 %v227, %v286
    %v288 = vpop.f32.mrf.mxu0
    %289 = vdwg.mxu0
    %v290 = vtanh.pop %v287
    %vm291 = vcmask 64512
    %292 = vst.msk [vmem:[#allocation10] sm:$0xff] %vm291, %v290
    // Predicated region
    $region46: #{policy_forward.1} parent=1 // pred_check
      _
    $region47: #{policy_forward.1} parent=1 // pred_check_branch
      %294 = sbr.rel (0) target = $region49
    $region48: #{policy_forward.1} parent=1 // pred_region
      %296 = vsyncadd [#allocation4], 0
      %s298 = sshll.u32 [#allocation10], 4
      %s299 = int_to_ptr.vmem [resolvable:$true] %s298
      %s300 = sshll.u32 %s7, 4
      %s301 = int_to_ptr.hbm [resolvable:$true] %s300
      %303 = dma.vmem_to_hbm [thread:$0]  %s299, 128, %s301, [#allocation4]
    $region49: #{policy_forward.1} parent=1 // pred_fallthru
      _
    // Predicated region
    $region50: #{policy_forward.1} parent=1 // pred_check
      _
    $region51: #{policy_forward.1} parent=1 // pred_check_branch
      %305 = sbr.rel (0) target = $region53
    $region52: #{policy_forward.1} parent=1 // pred_region
      %307 = dma.done [#allocation4], 128
    $region53: #{policy_forward.1} parent=1 // pred_fallthru
      _
    %308 = vsyncpa [#allocation3], 1
    %309 = vsyncpa [#allocation6], 1
    %310 = vsyncpa [#allocation9], 1
    %311 = vsyncpa [#allocation4], 1

</llo_original>
